<compile_context>
chip_gen: v7x
topology: tpu7x:2x2x1
jax: 0.10.0
libtpu: 0.0.40
codegen_flags: <defaults>
</compile_context>

<pallas_src>
import functools

import jax
import jax.numpy as jnp
from jax.experimental import pallas as pl
from jax.experimental.pallas import tpu as pltpu


def _round_up(n: int, m: int) -> int:
    return ((n + m - 1) // m) * m


def _actor_critic_kernel(x_ref, w1_ref, b1_ref, w2t_ref, b2t_ref, out_ref, *,
                         num_outputs):
    x = x_ref[...]                                         # (tb, IN) f32

    # Fused first layer (critic | actor) in a single MXU op: (tb, H2).
    h = jnp.dot(x, w1_ref[...], preferred_element_type=jnp.float32) + b1_ref[...]
    h = jnp.maximum(h, 0.0)

    # Second layer computed directly in transposed form: (OUT_ROWS, tb).
    # Row 0 = value, rows 1..num_outputs = actor logits, remaining rows = 0.
    y_t = jnp.dot(w2t_ref[...], jnp.transpose(h),
                  preferred_element_type=jnp.float32) + b2t_ref[...]

    # Numerically-stable softmax over the logit rows (sublane axis) only.
    row = jax.lax.broadcasted_iota(jnp.int32, y_t.shape, 0)
    is_logit = jnp.logical_and(row >= 1, row <= num_outputs)
    logits = jnp.where(is_logit, y_t, -jnp.inf)
    m = jnp.max(logits, axis=0, keepdims=True)             # (1, tb)
    e = jnp.exp(logits - m)                                # masked rows -> 0
    denom = jnp.sum(e, axis=0, keepdims=True)
    # Exact reciprocal: probs parameterize a Categorical; approx=True (EUP
    # vrcp, ~2^-12 rel err) would push sum(probs) off 1.0 beyond 1e-5.
    probs = e * pl.reciprocal(denom)

    # Transposed, lane-dense combined output: row 0 = value, 1..K = probs.
    out_ref[...] = jnp.where(row == 0, y_t, probs).astype(out_ref.dtype)


def pack_params(params, num_outputs):
    """Packs the 8 Linear params into 4 kernel operands (fused + transposed)."""
    (w1c, b1c, w2c, b2c, w1a, b1a, w2a, b2a) = params
    num_inputs, hidden = w1c.shape
    h2 = _round_up(2 * hidden, 128)             # lane-dense fused hidden width
    out_rows = _round_up(1 + num_outputs, 8)    # sublane-aligned output height

    # First layers fused along the output axis; pad columns are exact zeros,
    # so relu(0) = 0 and they contribute nothing downstream.
    w1 = jnp.zeros((num_inputs, h2), jnp.float32)
    w1 = w1.at[:, :hidden].set(w1c).at[:, hidden:2 * hidden].set(w1a)
    b1 = jnp.zeros((1, h2), jnp.float32)
    b1 = b1.at[:, :hidden].set(b1c).at[:, hidden:2 * hidden].set(b1a)

    # Transposed block-diagonal second layer: row 0 reads the critic half of
    # h, rows 1..num_outputs read the actor half.
    w2t = jnp.zeros((out_rows, h2), jnp.float32)
    w2t = w2t.at[0, :hidden].set(w2c[:, 0])
    w2t = w2t.at[1:1 + num_outputs, hidden:2 * hidden].set(w2a.T)
    b2t = jnp.zeros((out_rows, 1), jnp.float32)
    b2t = b2t.at[0, 0].set(b2c[0, 0])
    b2t = b2t.at[1:1 + num_outputs, 0].set(b2a[0, :])
    return w1, b1, w2t, b2t


def _choose_block_b(batch):
    """Batch tile size.

    Prefer a lane-dense tile (multiple of 128) that divides the batch exactly
    (no host-side padding pass over x), gives >=2 grid steps (so both v7x
    TensorCores get work), and is at most 1024 rows.  Fall back to one
    whole-batch tile (always a legal block) for small / ragged batches.
    """
    if batch % 256 == 0:
        bb = 1024
        while bb >= 128:
            if batch % bb == 0 and batch // bb >= 2:
                return bb
            bb -= 128
    if batch > 2048:
        return 1024            # ragged large batch: pad the tail, keep big tiles
    return batch


@functools.partial(jax.jit, static_argnames=("num_outputs", "block_b"))
def actor_critic_forward(x, w1, b1, w2t, b2t, *, num_outputs, block_b=None):
    """Fused actor-critic forward pass. Returns (probs, value)."""
    B, num_inputs = x.shape
    h2 = w1.shape[1]
    out_rows = w2t.shape[0]

    if block_b is None:
        block_b = _choose_block_b(B)
    b_pad = _round_up(B, block_b)
    if b_pad != B:
        x = jnp.pad(x, ((0, b_pad - B), (0, 0)))
    grid = (b_pad // block_b,)

    cost = pl.CostEstimate(
        flops=2 * b_pad * h2 * (num_inputs + out_rows),
        transcendentals=b_pad * out_rows,
        bytes_accessed=4 * (b_pad * num_inputs + out_rows * b_pad
                            + w1.size + b1.size + w2t.size + b2t.size),
    )

    out_t = pl.pallas_call(
        functools.partial(_actor_critic_kernel, num_outputs=num_outputs),
        out_shape=jax.ShapeDtypeStruct((out_rows, b_pad), jnp.float32),
        grid=grid,
        in_specs=[
            pl.BlockSpec((block_b, num_inputs), lambda i: (i, 0)),
            # Grid-invariant weights: index_map always (0, 0) -> VMEM-resident
            # across batch tiles (no per-step re-fetch), consumed whole (no
            # in-kernel slicing, hence no alignment hazards).
            pl.BlockSpec(w1.shape, lambda i: (0, 0)),
            pl.BlockSpec(b1.shape, lambda i: (0, 0)),
            pl.BlockSpec(w2t.shape, lambda i: (0, 0)),
            pl.BlockSpec(b2t.shape, lambda i: (0, 0)),
        ],
        out_specs=pl.BlockSpec((out_rows, block_b), lambda i: (0, i)),
        compiler_params=pltpu.CompilerParams(
            dimension_semantics=("parallel",),
            vmem_limit_bytes=32 * 1024 * 1024,
        ),
        cost_estimate=cost,
    )(x, w1, b1, w2t, b2t)

    # Contiguous row reads of the small (out_rows, B) output.
    value = jnp.transpose(out_t[0:1, :B])                   # (B, 1)
    probs = jnp.transpose(out_t[1:1 + num_outputs, :B])     # (B, num_outputs)
    return probs, value


def init_params(key, num_inputs, num_outputs, hidden_size):
    """Deterministic init mimicking PyTorch Linear's U(-1/sqrt(fan_in), +)."""
    ks = jax.random.split(key, 8)

    def lin(kw, kb, fan_in, fan_out):
        bound = 1.0 / jnp.sqrt(fan_in)
        w = jax.random.uniform(kw, (fan_in, fan_out), jnp.float32, -bound, bound)
        b = jax.random.uniform(kb, (1, fan_out), jnp.float32, -bound, bound)
        return w, b

    w1c, b1c = lin(ks[0], ks[1], num_inputs, hidden_size)
    w2c, b2c = lin(ks[2], ks[3], hidden_size, 1)
    w1a, b1a = lin(ks[4], ks[5], num_inputs, hidden_size)
    w2a, b2a = lin(ks[6], ks[7], hidden_size, num_outputs)
    return (w1c, b1c, w2c, b2c, w1a, b1a, w2a, b2a)


if __name__ == "__main__":
    num_inputs, num_outputs, hidden_size = 16, 4, 32
    batch = 8

    key = jax.random.PRNGKey(0)
    kx, kp = jax.random.split(key)
    x = jax.random.normal(kx, (batch, num_inputs), jnp.float32)
    params = init_params(kp, num_inputs, num_outputs, hidden_size)
    w1, b1, w2t, b2t = pack_params(params, num_outputs)

    probs, value = actor_critic_forward(x, w1, b1, w2t, b2t,
                                        num_outputs=num_outputs)
    jax.block_until_ready((probs, value))

    # Sanity check vs. pure-JAX reference of the original (unfused) module.
    (w1c, b1c, w2c, b2c, w1a, b1a, w2a, b2a) = params
    v_ref = jnp.maximum(x @ w1c + b1c, 0.0) @ w2c + b2c
    logits_ref = jnp.maximum(x @ w1a + b1a, 0.0) @ w2a + b2a
    p_ref = jax.nn.softmax(logits_ref, axis=1)
    assert value.shape == (batch, 1)
    assert probs.shape == (batch, num_outputs)
    assert jnp.allclose(value, v_ref, atol=1e-5)
    assert jnp.allclose(probs, p_ref, atol=1e-5)
    assert jnp.allclose(jnp.sum(probs, axis=1), 1.0, atol=1e-5)

    print("KERNEL_OK")
</pallas_src>

<mosaic_0001>
module attributes {stable_mosaic.version = 11 : i64} {
  func.func @_actor_critic_kernel(%arg0: i32, %arg1: memref<8x16xf32, #tpu.memory_space<vmem>>, %arg2: memref<16x128xf32, #tpu.memory_space<vmem>>, %arg3: memref<1x128xf32, #tpu.memory_space<vmem>>, %arg4: memref<8x128xf32, #tpu.memory_space<vmem>>, %arg5: memref<8x1xf32, #tpu.memory_space<vmem>>, %arg6: memref<8x8xf32, #tpu.memory_space<vmem>>) attributes {dimension_semantics = [#tpu.dimension_semantics<parallel>], iteration_bounds = array<i64: 1>, scalar_prefetch = 0 : i64, scratch_operands = 0 : i64, tpu.core_type = #tpu.core_type<tc>, window_params = [{transform_indices = @transform_0, window_bounds = array<i64: 8, 16>}, {pipeline_mode = #tpu.pipeline_mode<synchronous>, transform_indices = @transform_1, window_bounds = array<i64: 16, 128>}, {pipeline_mode = #tpu.pipeline_mode<synchronous>, transform_indices = @transform_2, window_bounds = array<i64: 1, 128>}, {pipeline_mode = #tpu.pipeline_mode<synchronous>, transform_indices = @transform_3, window_bounds = array<i64: 8, 128>}, {pipeline_mode = #tpu.pipeline_mode<synchronous>, transform_indices = @transform_4, window_bounds = array<i64: 8, 1>}, {transform_indices = @transform_5, window_bounds = array<i64: 8, 8>}]} {
    %c0 = arith.constant 0 : index
    %c0_0 = arith.constant 0 : index
    %0 = vector.load %arg1[%c0, %c0_0] : memref<8x16xf32, #tpu.memory_space<vmem>>, vector<8x16xf32>
    %c0_1 = arith.constant 0 : index
    %c0_2 = arith.constant 0 : index
    %1 = vector.load %arg2[%c0_1, %c0_2] : memref<16x128xf32, #tpu.memory_space<vmem>>, vector<16x128xf32>
    %cst = arith.constant dense<0.000000e+00> : vector<8x128xf32>
    %2 = tpu.matmul %0, %1, %cst {dimension_numbers = #tpu.dot_dimension_numbers<[1], [0], [0], [1], [0, 0, 1, 1], [], []>} : vector<8x16xf32>, vector<16x128xf32>, vector<8x128xf32> -> vector<8x128xf32>
    %c0_3 = arith.constant 0 : index
    %c0_4 = arith.constant 0 : index
    %3 = vector.load %arg3[%c0_3, %c0_4] : memref<1x128xf32, #tpu.memory_space<vmem>>, vector<1x128xf32>
    %4 = vector.broadcast %3 : vector<1x128xf32> to vector<8x128xf32>
    %5 = arith.addf %2, %4 : vector<8x128xf32>
    %cst_5 = arith.constant 0.000000e+00 : f32
    %6 = vector.broadcast %cst_5 : f32 to vector<8x128xf32>
    %7 = arith.maximumf %5, %6 : vector<8x128xf32>
    %c0_6 = arith.constant 0 : index
    %c0_7 = arith.constant 0 : index
    %8 = vector.load %arg4[%c0_6, %c0_7] : memref<8x128xf32, #tpu.memory_space<vmem>>, vector<8x128xf32>
    %9 = tpu.transpose %7, [1, 0] : vector<8x128xf32> -> vector<128x8xf32>
    %cst_8 = arith.constant dense<0.000000e+00> : vector<8x8xf32>
    %10 = tpu.matmul %8, %9, %cst_8 {dimension_numbers = #tpu.dot_dimension_numbers<[1], [0], [0], [1], [0, 0, 1, 1], [], []>} : vector<8x128xf32>, vector<128x8xf32>, vector<8x8xf32> -> vector<8x8xf32>
    %c0_9 = arith.constant 0 : index
    %c0_10 = arith.constant 0 : index
    %11 = vector.load %arg5[%c0_9, %c0_10] : memref<8x1xf32, #tpu.memory_space<vmem>>, vector<8x1xf32>
    %12 = vector.broadcast %11 : vector<8x1xf32> to vector<8x8xf32>
    %13 = arith.addf %10, %12 : vector<8x8xf32>
    %14 = tpu.iota {dimensions = array<i32: 0>} : vector<8x8xi32>
    %c1_i32 = arith.constant 1 : i32
    %15 = vector.broadcast %c1_i32 : i32 to vector<8x8xi32>
    %16 = arith.cmpi sge, %14, %15 : vector<8x8xi32>
    %c4_i32 = arith.constant 4 : i32
    %17 = vector.broadcast %c4_i32 : i32 to vector<8x8xi32>
    %18 = arith.cmpi sle, %14, %17 : vector<8x8xi32>
    %19 = arith.andi %16, %18 : vector<8x8xi1>
    %cst_11 = arith.constant 0xFF800000 : f32
    %20 = vector.broadcast %cst_11 : f32 to vector<8x8xf32>
    %21 = arith.select %19, %13, %20 : vector<8x8xi1>, vector<8x8xf32>
    %cst_12 = arith.constant dense<0xFF800000> : vector<8xf32>
    %22 = vector.multi_reduction <maximumf>, %21, %cst_12 [0] : vector<8x8xf32> to vector<8xf32>
    %23 = vector.shape_cast %22 : vector<8xf32> to vector<1x8xf32>
    %24 = vector.broadcast %23 : vector<1x8xf32> to vector<8x8xf32>
    %25 = arith.subf %21, %24 : vector<8x8xf32>
    %26 = math.exp %25 : vector<8x8xf32>
    %cst_13 = arith.constant dense<0.000000e+00> : vector<8xf32>
    %27 = vector.multi_reduction <add>, %26, %cst_13 [0] : vector<8x8xf32> to vector<8xf32>
    %28 = vector.shape_cast %27 : vector<8xf32> to vector<1x8xf32>
    %29 = tpu.reciprocal %28 : vector<1x8xf32> -> vector<1x8xf32>
    %30 = vector.broadcast %29 : vector<1x8xf32> to vector<8x8xf32>
    %31 = arith.mulf %26, %30 : vector<8x8xf32>
    %c0_i32 = arith.constant 0 : i32
    %32 = vector.broadcast %c0_i32 : i32 to vector<8x8xi32>
    %33 = arith.cmpi eq, %14, %32 : vector<8x8xi32>
    %34 = arith.select %33, %13, %31 : vector<8x8xi1>, vector<8x8xf32>
    %c0_14 = arith.constant 0 : index
    %c0_15 = arith.constant 0 : index
    %35 = vector.load %arg6[%c0_14, %c0_15] : memref<8x8xf32, #tpu.memory_space<vmem>>, vector<8x8xf32>
    tpu.vector_store %arg6[%c0_14, %c0_15], %34 {strides = array<i32>} : memref<8x8xf32, #tpu.memory_space<vmem>>, vector<8x8xf32>,
    return
  }
  func.func @transform_0(%arg0: i32) -> (i32, i32) {
    %c0_i32 = arith.constant 0 : i32
    %c0_i32_0 = arith.constant 0 : i32
    return %arg0, %c0_i32 : i32, i32
  }
  func.func @transform_1(%arg0: i32) -> (i32, i32) {
    %c0_i32 = arith.constant 0 : i32
    %c0_i32_0 = arith.constant 0 : i32
    %c0_i32_1 = arith.constant 0 : i32
    return %c0_i32, %c0_i32_0 : i32, i32
  }
  func.func @transform_2(%arg0: i32) -> (i32, i32) {
    %c0_i32 = arith.constant 0 : i32
    %c0_i32_0 = arith.constant 0 : i32
    %c0_i32_1 = arith.constant 0 : i32
    return %c0_i32, %c0_i32_0 : i32, i32
  }
  func.func @transform_3(%arg0: i32) -> (i32, i32) {
    %c0_i32 = arith.constant 0 : i32
    %c0_i32_0 = arith.constant 0 : i32
    %c0_i32_1 = arith.constant 0 : i32
    return %c0_i32, %c0_i32_0 : i32, i32
  }
  func.func @transform_4(%arg0: i32) -> (i32, i32) {
    %c0_i32 = arith.constant 0 : i32
    %c0_i32_0 = arith.constant 0 : i32
    %c0_i32_1 = arith.constant 0 : i32
    return %c0_i32, %c0_i32_0 : i32, i32
  }
  func.func @transform_5(%arg0: i32) -> (i32, i32) {
    %c0_i32 = arith.constant 0 : i32
    %c0_i32_0 = arith.constant 0 : i32
    return %c0_i32, %arg0 : i32, i32
  }
}

</mosaic_0001>

<llo_original>
// kernel: actor_critic_forward.1
$region0: #{actor_critic_forward.1}
  #allocation0 [shape = 'u32[]', space=smem, size = 0x4, offset = 0x4, fixed_abs, tag = 'smem constant byte address 0x4 - core index']
  #allocation1 [shape = 'u32[144,128]{1,0:T(1,128)}', space=vmem, size = 0x12000, scoped, tag = 'internal scratch']
  %s0 = inlined_call_operand.vmem [shape: f32[8,16], index: 0, kind: input, shape index: {}]
  %s1 = inlined_call_operand.hbm [shape: f32[16,128], index: 1, kind: input, shape index: {}]
  %s2 = inlined_call_operand.hbm [shape: f32[1,128], index: 2, kind: input, shape index: {}]
  %s3 = inlined_call_operand.vmem [shape: f32[8,128], index: 3, kind: input, shape index: {}]
  %s4 = inlined_call_operand.vmem [shape: f32[8,1], index: 4, kind: input, shape index: {}]
  %s5 = inlined_call_operand.vmem [shape: f32[8,8], index: 5, kind: output, shape index: {}]
  %s6 = sld [smem:[#allocation0]]
  $region38: #{actor_critic_forward.1} parent=0
    _
  %s8 = ssub.s32 1, %s6
  %s9 = scalar_select 0, %s8, %s6
  $region1: #{actor_critic_forward.1} parent=0
    #allocation2 [shape = 'u8[8192]{0}', space=vmem, size = 0x2000, scoped, tag = 'input window, operand 1, single buffered']
    #allocation3 [shape = 's32[1]{0}', space=sflag, size = 0x4, scoped, tag = 'scoped memory for actor_critic_forward.1']
    #allocation4 [shape = 'u8[512]{0}', space=vmem, size = 0x400, scoped, tag = 'input window, operand 2, single buffered']
    #allocation5 [shape = 's32[1]{0}', space=sflag, size = 0x4, scoped, tag = 'scoped memory for actor_critic_forward.1']
    %10 = vsyncpa [#allocation3], 0
    %11 = vsyncpa [#allocation5], 0
    // Predicated region
    $region2: #{actor_critic_forward.1} parent=1 // pred_check
      _
    $region3: #{actor_critic_forward.1} parent=1 // pred_check_branch
      %13 = sbr.rel (0) target = $region5
    $region4: #{actor_critic_forward.1} parent=1 // pred_region
      _
    $region5: #{actor_critic_forward.1} parent=1 // pred_fallthru
      _
    // Predicated region
    $region6: #{actor_critic_forward.1} parent=1 // pred_check
      _
    $region7: #{actor_critic_forward.1} parent=1 // pred_check_branch
      %15 = sbr.rel (0) target = $region9
    $region8: #{actor_critic_forward.1} parent=1 // pred_region
      %s17 = ssub.s32 256, 256
      %18 = vsyncadd [#allocation3], %s17
      %s19 = sshll.u32 [#allocation2], 4
      %s20 = int_to_ptr.vmem [resolvable:$true] %s19
      %25 = dma.hbm_to_vmem [thread:$0]  %s1, 256, %s20, [#allocation3], 128, 128, 8
    $region9: #{actor_critic_forward.1} parent=1 // pred_fallthru
      _
    // Predicated region
    $region10: #{actor_critic_forward.1} parent=1 // pred_check
      _
    $region11: #{actor_critic_forward.1} parent=1 // pred_check_branch
      %27 = sbr.rel (0) target = $region13
    $region12: #{actor_critic_forward.1} parent=1 // pred_region
      %s29 = ssub.s32 16, 16
      %30 = vsyncadd [#allocation5], %s29
      %s32 = sshll.u32 [#allocation4], 4
      %s33 = int_to_ptr.vmem [resolvable:$true] %s32
      %35 = dma.hbm_to_vmem [thread:$0]  %s2, 16, %s33, [#allocation5]
    $region13: #{actor_critic_forward.1} parent=1 // pred_fallthru
      _
    // Predicated region
    $region14: #{actor_critic_forward.1} parent=1 // pred_check
      _
    $region15: #{actor_critic_forward.1} parent=1 // pred_check_branch
      %37 = sbr.rel (0) target = $region17
    $region16: #{actor_critic_forward.1} parent=1 // pred_region
      _
    $region17: #{actor_critic_forward.1} parent=1 // pred_fallthru
      _
    // Predicated region
    $region18: #{actor_critic_forward.1} parent=1 // pred_check
      _
    $region19: #{actor_critic_forward.1} parent=1 // pred_check_branch
      %39 = sbr.rel (0) target = $region21
    $region20: #{actor_critic_forward.1} parent=1 // pred_region
      _
    $region21: #{actor_critic_forward.1} parent=1 // pred_fallthru
      _
    // Predicated region
    $region22: #{actor_critic_forward.1} parent=1 // pred_check
      _
    $region23: #{actor_critic_forward.1} parent=1 // pred_check_branch
      %41 = sbr.rel (0) target = $region25
    $region24: #{actor_critic_forward.1} parent=1 // pred_region
      %42 = dma.done [#allocation3], 256
    $region25: #{actor_critic_forward.1} parent=1 // pred_fallthru
      _
    // Predicated region
    $region26: #{actor_critic_forward.1} parent=1 // pred_check
      _
    $region27: #{actor_critic_forward.1} parent=1 // pred_check_branch
      %44 = sbr.rel (0) target = $region29
    $region28: #{actor_critic_forward.1} parent=1 // pred_region
      %45 = dma.done [#allocation5], 16
    $region29: #{actor_critic_forward.1} parent=1 // pred_fallthru
      _
    %v46 = vld [vmem:[%s0] sm:$0xff]
    %v47 = vld [vmem:[#allocation2] sm:$0xff]
    %v48 = vld [vmem:[#allocation2 + $0x8] sm:$0xff]
    %v49 = vld [vmem:[#allocation4] sm:$0x1]
    %v51 = vlaneseq
    %v52 = vshrl.u32 %v51, 7
    %v53 = vsub.s32 0, %v52
    %v54 = vrot.slane %v49, %v53
    %vm56 = vcmask 130048
    %v58 = vsel %vm56, %v46, 0
    %60 = vmatprep.subr.mxu0 0.0
    %61 = vmatpush1.msra.mxu0 %v47
    %62 = vmatprep.subr.mxu0 0.0
    %63 = vmatpush1.msra.mxu0 %v48
    %64 = vmatprep.subr.mxu0 0.0
    %65 = vmatpush1.msra.mxu0 0.0
    %66 = vmatprep.subr.mxu0 0.0
    %67 = vmatpush1.msra.mxu0 0.0
    %68 = vmatprep.subr.mxu0 0.0
    %69 = vmatpush1.msra.mxu0 0.0
    %70 = vmatprep.subr.mxu0 0.0
    %71 = vmatpush1.msra.mxu0 0.0
    %72 = vmatprep.subr.mxu0 0.0
    %73 = vmatpush1.msra.mxu0 0.0
    %74 = vmatprep.subr.mxu0 0.0
    %75 = vmatpush1.msra.mxu0 0.0
    %76 = vmatprep.subr.mxu0 0.0
    %77 = vmatpush1.msra.mxu0 0.0
    %78 = vmatprep.subr.mxu0 0.0
    %79 = vmatpush1.msra.mxu0 0.0
    %80 = vmatprep.subr.mxu0 0.0
    %81 = vmatpush1.msra.mxu0 0.0
    %82 = vmatprep.subr.mxu0 0.0
    %83 = vmatpush1.msra.mxu0 0.0
    %84 = vmatprep.subr.mxu0 0.0
    %85 = vmatpush1.msra.mxu0 0.0
    %86 = vmatprep.subr.mxu0 0.0
    %87 = vmatpush1.msra.mxu0 0.0
    %88 = vmatprep.subr.mxu0 0.0
    %89 = vmatpush1.msra.mxu0 0.0
    %90 = vmatprep.subr.mxu0 0.0
    %91 = vmatpush1.msra.mxu0 0.0
    %92 = vmatprep.subr.mxu0 0.0
    %93 = vmatpush1.msra.mxu0 0.0
    %94 = vmatprep.subr.mxu0 0.0
    %95 = vmatpush1.msra.mxu0 0.0
    %96 = vmatprep.subr.mxu0 0.0
    %97 = vmatpush1.msra.mxu0 0.0
    %98 = vmatprep.subr.mxu0 0.0
    %99 = vmatpush1.msra.mxu0 0.0
    %100 = vmatprep.subr.mxu0 0.0
    %101 = vmatpush1.msra.mxu0 0.0
    %102 = vmatprep.subr.mxu0 0.0
    %103 = vmatpush1.msra.mxu0 0.0
    %104 = vmatprep.subr.mxu0 0.0
    %105 = vmatpush1.msra.mxu0 0.0
    %106 = vmatprep.subr.mxu0 0.0
    %107 = vmatpush1.msra.mxu0 0.0
    %108 = vmatprep.subr.mxu0 0.0
    %109 = vmatpush1.msra.mxu0 0.0
    %110 = vmatprep.subr.mxu0 0.0
    %111 = vmatpush1.msra.mxu0 0.0
    %112 = vmatprep.subr.mxu0 0.0
    %113 = vmatpush1.msra.mxu0 0.0
    %114 = vmatprep.subr.mxu0 0.0
    %115 = vmatpush1.msra.mxu0 0.0
    %116 = vmatprep.subr.mxu0 0.0
    %117 = vmatpush1.msra.mxu0 0.0
    %118 = vmatprep.subr.mxu0 0.0
    %119 = vmatpush1.msra.mxu0 0.0
    %120 = vmatprep.subr.mxu0 0.0
    %121 = vmatpush1.msra.mxu0 0.0
    %122 = vmatprep.subr.mxu0 0.0
    %123 = vmatpush1.msra.mxu0 0.0
    %124 = vmatprep.mubr.f32.mxu0 0.0
    %125 = vmatmul.mubr.f32.gmra.mrb[0].mxu0 %v58
    %v126 = vpop.f32.mrb[0].mxu0
    %v127 = vadd.f32 %v54, %v126
    %v128 = vpop.f32.mrb[0].mxu0
    %129 = vdwg.mxu0
    %v130 = vmax.f32 %v127, 0.0
    %v131 = vld [vmem:[%s3] sm:$0xff]
    %v132 = vld [vmem:[%s4] sm:$0xff]
    %134 = vset.pattern.permute.xlu0 0
    %135 = vperm.xlu0 %134, %v132
    %v136 = vpop.permute.xlu0 %135
    %138 = vmatprep.subr.mxu0 0.0
    %139 = vmatpush1.xpose.msra.mxu0 %v130
    %140 = vmatprep.subr.mxu0 0.0
    %141 = vmatpush1.xpose.msra.mxu0 0.0
    %142 = vmatprep.subr.mxu0 0.0
    %143 = vmatpush1.xpose.msra.mxu0 0.0
    %144 = vmatprep.subr.mxu0 0.0
    %145 = vmatpush1.xpose.msra.mxu0 0.0
    %146 = vmatprep.subr.mxu0 0.0
    %147 = vmatpush1.xpose.msra.mxu0 0.0
    %148 = vmatprep.subr.mxu0 0.0
    %149 = vmatpush1.xpose.msra.mxu0 0.0
    %150 = vmatprep.subr.mxu0 0.0
    %151 = vmatpush1.xpose.msra.mxu0 0.0
    %152 = vmatprep.subr.mxu0 0.0
    %153 = vmatpush1.xpose.msra.mxu0 0.0
    %154 = vmatprep.subr.mxu0 0.0
    %155 = vmatpush1.xpose.msra.mxu0 0.0
    %156 = vmatprep.subr.mxu0 0.0
    %157 = vmatpush1.xpose.msra.mxu0 0.0
    %158 = vmatprep.subr.mxu0 0.0
    %159 = vmatpush1.xpose.msra.mxu0 0.0
    %160 = vmatprep.subr.mxu0 0.0
    %161 = vmatpush1.xpose.msra.mxu0 0.0
    %162 = vmatprep.subr.mxu0 0.0
    %163 = vmatpush1.xpose.msra.mxu0 0.0
    %164 = vmatprep.subr.mxu0 0.0
    %165 = vmatpush1.xpose.msra.mxu0 0.0
    %166 = vmatprep.subr.mxu0 0.0
    %167 = vmatpush1.xpose.msra.mxu0 0.0
    %168 = vmatprep.subr.mxu0 0.0
    %169 = vmatpush1.xpose.msra.mxu0 0.0
    %170 = vmatprep.subr.mxu0 0.0
    %171 = vmatpush1.xpose.msra.mxu0 0.0
    %172 = vmatprep.subr.mxu0 0.0
    %173 = vmatpush1.xpose.msra.mxu0 0.0
    %174 = vmatprep.subr.mxu0 0.0
    %175 = vmatpush1.xpose.msra.mxu0 0.0
    %176 = vmatprep.subr.mxu0 0.0
    %177 = vmatpush1.xpose.msra.mxu0 0.0
    %178 = vmatprep.subr.mxu0 0.0
    %179 = vmatpush1.xpose.msra.mxu0 0.0
    %180 = vmatprep.subr.mxu0 0.0
    %181 = vmatpush1.xpose.msra.mxu0 0.0
    %182 = vmatprep.subr.mxu0 0.0
    %183 = vmatpush1.xpose.msra.mxu0 0.0
    %184 = vmatprep.subr.mxu0 0.0
    %185 = vmatpush1.xpose.msra.mxu0 0.0
    %186 = vmatprep.subr.mxu0 0.0
    %187 = vmatpush1.xpose.msra.mxu0 0.0
    %188 = vmatprep.subr.mxu0 0.0
    %189 = vmatpush1.xpose.msra.mxu0 0.0
    %190 = vmatprep.subr.mxu0 0.0
    %191 = vmatpush1.xpose.msra.mxu0 0.0
    %192 = vmatprep.subr.mxu0 0.0
    %193 = vmatpush1.xpose.msra.mxu0 0.0
    %194 = vmatprep.subr.mxu0 0.0
    %195 = vmatpush1.xpose.msra.mxu0 0.0
    %196 = vmatprep.subr.mxu0 0.0
    %197 = vmatpush1.xpose.msra.mxu0 0.0
    %198 = vmatprep.subr.mxu0 0.0
    %199 = vmatpush1.xpose.msra.mxu0 0.0
    %200 = vmatprep.subr.mxu0 0.0
    %201 = vmatpush1.xpose.msra.mxu0 0.0
    %202 = vmatprep.mubr.f32.mxu0 0.0
    %203 = vmatmul.mubr.f32.gmra.mrb[0].mxu0 %v131
    %v204 = vpop.f32.mrb[0].mxu0
    %v205 = vadd.f32 %v136, %v204
    %v206 = vpop.f32.mrb[0].mxu0
    %207 = vdwg.mxu0
    %v208 = vlaneseq
    %v209 = vshrl.u32 %v208, 7
    %vm210 = vcmp.ge.s32.totalorder %v209, 1
    %vm211 = vcmp.le.s32.totalorder %v209, 4
    %vm212 = vmand %vm210, %vm211
    %v213 = vsel %vm212, %v205, -inf
    %vm214 = vcmask 64512
    %v215 = vsel %vm214, %v213, -inf
    %v216 = vrot.slane %v215, 4
    %v217 = vmax.f32 %v215, %v216
    %v218 = vrot.slane %v217, 2
    %v219 = vmax.f32 %v217, %v218
    %v220 = vrot.slane %v219, 1
    %v221 = vmax.f32 %v219, %v220
    %v222 = vsub.f32 %v213, %v221
    %v223 = vmul.f32 %v222, 1.442695
    %v224 = vpow.pop %v223
    %v225 = vsel %vm214, %v224, 0.0
    %v226 = vrot.slane %v225, 4
    %v227 = vadd.f32 %v225, %v226
    %v228 = vrot.slane %v227, 2
    %v229 = vadd.f32 %v227, %v228
    %v230 = vrot.slane %v229, 1
    %v231 = vadd.f32 %v229, %v230
    %v232 = vrcp.pop %v231
    %v233 = vmul.f32 %v224, %v232
    %vm234 = vcmp.eq.s32.totalorder %v209, 0
    %v235 = vsel %vm234, %v205, %v233
    %236 = vst.msk [vmem:[%s5] sm:$0xff] %vm214, %v235
    // Predicated region
    $region30: #{actor_critic_forward.1} parent=1 // pred_check
      _
    $region31: #{actor_critic_forward.1} parent=1 // pred_check_branch
      %238 = sbr.rel (0) target = $region33
    $region32: #{actor_critic_forward.1} parent=1 // pred_region
      _
    $region33: #{actor_critic_forward.1} parent=1 // pred_fallthru
      _
    // Predicated region
    $region34: #{actor_critic_forward.1} parent=1 // pred_check
      _
    $region35: #{actor_critic_forward.1} parent=1 // pred_check_branch
      %240 = sbr.rel (0) target = $region37
    $region36: #{actor_critic_forward.1} parent=1 // pred_region
      _
    $region37: #{actor_critic_forward.1} parent=1 // pred_fallthru
      _
    %241 = vsyncpa [#allocation3], 1
    %242 = vsyncpa [#allocation5], 1

</llo_original>
